<compile_context>
chip_gen: v6e
topology: v6e:2x2x1
jax: 0.10.0
libtpu: 0.0.40
codegen_flags: <defaults>
</compile_context>

<pallas_src>
import jax
import jax.numpy as jnp
from jax.experimental import pallas as pl
from jax.experimental.pallas import tpu as pltpu


def _largest_divisor_leq(n, cap):
    cap = max(1, min(n, cap))
    for d in range(cap, 0, -1):
        if n % d == 0:
            return d
    return 1


def _round_down_128(v):
    return max(128, (v // 128) * 128)


def _vmem_hw_params():
    """(usable VMEM budget bytes, spatial-tile target) for this generation."""
    try:
        cap = int(pltpu.get_tpu_info().vmem_capacity_bytes)
    except Exception:
        cap = 64 << 20  # conservative (v7x-sized) fallback
    budget = cap - (8 << 20)                      # ~56 MiB v7x, ~120 MiB v5e/v6e
    target_hw = 4096 if cap >= (96 << 20) else 2048
    return budget, target_hw


def linear_block_forward(x_nchw, weight_oihw, *, compute_dtype=jnp.bfloat16,
                         out_dtype=None):
    """1x1 conv (groups=1, stride=1, pad=0, no bias) == channel matmul.

    x_nchw:      (N, Cin, H, W)
    weight_oihw: (Cout, Cin, 1, 1)   PyTorch Conv2d weight layout
    returns:     (N, Cout, H, W), dtype = x dtype (or out_dtype if given)
    """
    N, Cin, H, W = x_nchw.shape
    Cout, Cin_w, kh, kw = weight_oihw.shape
    assert (kh, kw) == (1, 1), (
        "only kernel=(1,1), stride=(1,1), padding=(0,0) is supported")
    assert Cin_w == Cin, "groups != 1 is not supported"
    # TODO(synk): grouped 1x1 conv (groups>1) would need a block-diagonal
    # weight tiling; not implemented (module default is groups=1).

    out_dtype = x_nchw.dtype if out_dtype is None else jnp.dtype(out_dtype)
    HW = H * W

    # Pure reshapes (no transpose, no HBM copy): spatial stays on the lane axis.
    x_rows = x_nchw.reshape(N, Cin, HW)          # native dtype, cast in-kernel
    w = weight_oihw.reshape(Cout, Cin)

    x_isz = jnp.dtype(x_rows.dtype).itemsize
    w_isz = jnp.dtype(w.dtype).itemsize
    o_isz = jnp.dtype(out_dtype).itemsize
    c_isz = (jnp.dtype(compute_dtype).itemsize
             if compute_dtype is not None else max(x_isz, w_isz))

    budget, target_hw = _vmem_hw_params()

    # --- spatial tile: 128-multiple + cdiv grid (masked tail), full-extent
    # --- only when HW < 128.
    if HW < 128:
        tile_hw = HW
    elif HW % 128 == 0:
        tile_hw = min(HW, target_hw)
    else:
        tile_hw = min(_round_down_128(HW), target_hw)

    # --- batch tile: amortize per-step overhead at small spatial sizes.
    n_tile = _largest_divisor_leq(N, 8) if HW <= 1024 else 1

    # --- Cout: untiled unless VMEM forces tiling.
    tile_co = Cout

    def vmem_need(n_t, t_co, t_hw):
        pipe = 2 * (t_co * Cin * w_isz
                    + n_t * Cin * t_hw * x_isz
                    + n_t * t_co * t_hw * o_isz)          # double-buffered DMA
        interm = (t_co * Cin * c_isz                      # in-kernel bf16 weight
                  + Cin * t_hw * c_isz                    # per-slice bf16 act
                  + t_co * t_hw * 4)                      # f32 dot result
        return pipe + interm

    # Shrink order: spatial tile -> batch tile -> Cout tile.
    while vmem_need(n_tile, tile_co, tile_hw) > budget and tile_hw > 128:
        tile_hw = _round_down_128(tile_hw // 2)
    while vmem_need(n_tile, tile_co, tile_hw) > budget and n_tile > 1:
        n_tile = _largest_divisor_leq(N, n_tile - 1)
    while (vmem_need(n_tile, tile_co, tile_hw) > budget and tile_co > 128
           and tile_co % 2 == 0 and (tile_co // 2) % 8 == 0
           and Cout % (tile_co // 2) == 0):
        tile_co //= 2

    g_co = Cout // tile_co
    g_n = N // n_tile
    g_hw = -(-HW // tile_hw)

    # v7x megacore: avoid a degenerate single-step grid when we can split work.
    if g_co * g_n * g_hw == 1:
        if tile_hw > 128:
            tile_hw = _round_down_128(tile_hw // 2)
            g_hw = -(-HW // tile_hw)
        elif n_tile > 1:
            n_tile = _largest_divisor_leq(N, n_tile - 1)
            g_n = N // n_tile

    grid = (g_co, g_n, g_hw)   # Cout-tile axis outermost -> weight resident

    need = vmem_need(n_tile, tile_co, tile_hw)
    vmem_limit = int(min(max(need + (8 << 20), 32 << 20), budget))

    def kernel(w_ref, x_ref, o_ref):
        # w_ref: (tile_co, Cin)            weight tile (native dtype)
        # x_ref: (n_tile, Cin, tile_hw)    activation tile (native dtype)
        # o_ref: (n_tile, tile_co, tile_hw)
        wv = w_ref[...]
        if compute_dtype is not None:
            wv = wv.astype(compute_dtype)          # cast in VMEM, not in HBM
        for n in range(n_tile):                    # static, small -> unrolled
            xv = x_ref[n]
            if compute_dtype is not None:
                xv = xv.astype(compute_dtype)
            o_ref[n] = jnp.dot(
                wv, xv, preferred_element_type=jnp.float32
            ).astype(o_ref.dtype)

    out_rows = pl.pallas_call(
        kernel,
        out_shape=jax.ShapeDtypeStruct((N, Cout, HW), out_dtype),
        grid_spec=pltpu.PrefetchScalarGridSpec(
            num_scalar_prefetch=0,
            grid=grid,
            in_specs=[
                # Weight tile: index depends only on the OUTERMOST axis ->
                # fetched once per Cout tile (exactly once when Cout untiled).
                pl.BlockSpec((tile_co, Cin), lambda j, n, i: (j, 0)),
                # Activation tile: batch-blocked, spatial on lanes.
                pl.BlockSpec((n_tile, Cin, tile_hw), lambda j, n, i: (n, 0, i)),
            ],
            out_specs=pl.BlockSpec(
                (n_tile, tile_co, tile_hw), lambda j, n, i: (n, j, i)),
        ),
        compiler_params=pltpu.CompilerParams(
            dimension_semantics=("parallel", "parallel", "parallel"),
            vmem_limit_bytes=vmem_limit,
        ),
    )(w, x_rows)

    # Pure reshape back to NCHW (channels already in place, no transpose).
    return out_rows.reshape(N, Cout, H, W)


if __name__ == "__main__":
    key = jax.random.PRNGKey(0)
    k_x, k_w = jax.random.split(key)

    # Small shapes consistent with the module defaults.
    N, Cin, H, W = 2, 4, 16, 16
    Cout = 8

    x = jax.random.normal(k_x, (N, Cin, H, W), dtype=jnp.float32)
    # Deterministic synthetic weight, PyTorch Conv2d layout (Cout, Cin, 1, 1).
    weight = jax.random.normal(k_w, (Cout, Cin, 1, 1), dtype=jnp.float32) * 0.1
    # NOTE: BatchNorm2d params exist in __init__ but are unused in forward(),
    # so they are intentionally not created here.

    out = linear_block_forward(x, weight)
    out = jax.block_until_ready(out)

    # Sanity-check against a plain-JAX f32 reference (1x1 conv == einsum).
    ref = jnp.einsum("nchw,oc->nohw", x, weight[:, :, 0, 0])
    assert out.shape == (N, Cout, H, W)
    assert out.dtype == x.dtype
    # bf16 compute with f32 accumulation -> loosened tolerance vs f32 reference.
    max_err = float(jnp.max(jnp.abs(out - ref)))
    assert jnp.allclose(out, ref, atol=2e-2, rtol=2e-2), max_err

    print("KERNEL_OK")
</pallas_src>

<mosaic_0001>
module attributes {stable_mosaic.version = 11 : i64} {
  func.func @kernel(%arg0: i32, %arg1: i32, %arg2: i32, %arg3: memref<8x4xf32, #tpu.memory_space<vmem>>, %arg4: memref<2x4x128xf32, #tpu.memory_space<vmem>>, %arg5: memref<2x8x128xf32, #tpu.memory_space<vmem>>) attributes {dimension_semantics = [#tpu.dimension_semantics<parallel>, #tpu.dimension_semantics<parallel>, #tpu.dimension_semantics<parallel>], iteration_bounds = array<i64: 1, 1, 2>, scalar_prefetch = 0 : i64, scratch_operands = 0 : i64, tpu.core_type = #tpu.core_type<tc>, window_params = [{transform_indices = @transform_0, window_bounds = array<i64: 8, 4>}, {transform_indices = @transform_1, window_bounds = array<i64: 2, 4, 128>}, {transform_indices = @transform_2, window_bounds = array<i64: 2, 8, 128>}]} {
    %c0 = arith.constant 0 : index
    %c0_0 = arith.constant 0 : index
    %0 = vector.load %arg3[%c0, %c0_0] : memref<8x4xf32, #tpu.memory_space<vmem>>, vector<8x4xf32>
    %1 = arith.truncf %0 : vector<8x4xf32> to vector<8x4xbf16>
    %c0_1 = arith.constant 0 : index
    %c0_2 = arith.constant 0 : index
    %c0_3 = arith.constant 0 : index
    %2 = vector.load %arg4[%c0_1, %c0_2, %c0_3] : memref<2x4x128xf32, #tpu.memory_space<vmem>>, vector<1x4x128xf32>
    %3 = vector.shape_cast %2 : vector<1x4x128xf32> to vector<4x128xf32>
    %4 = arith.truncf %3 : vector<4x128xf32> to vector<4x128xbf16>
    %cst = arith.constant dense<0.000000e+00> : vector<8x128xf32>
    %5 = tpu.matmul %1, %4, %cst {dimension_numbers = #tpu.dot_dimension_numbers<[1], [0], [0], [1], [0, 0, 1, 1], [], []>} : vector<8x4xbf16>, vector<4x128xbf16>, vector<8x128xf32> -> vector<8x128xf32>
    %c0_4 = arith.constant 0 : index
    %c0_5 = arith.constant 0 : index
    %c0_6 = arith.constant 0 : index
    %6 = vector.load %arg5[%c0_4, %c0_5, %c0_6] : memref<2x8x128xf32, #tpu.memory_space<vmem>>, vector<1x8x128xf32>
    %7 = vector.shape_cast %6 : vector<1x8x128xf32> to vector<8x128xf32>
    %8 = vector.shape_cast %5 : vector<8x128xf32> to vector<1x8x128xf32>
    tpu.vector_store %arg5[%c0_4, %c0_5, %c0_6], %8 {strides = array<i32>} : memref<2x8x128xf32, #tpu.memory_space<vmem>>, vector<1x8x128xf32>,
    %c1 = arith.constant 1 : index
    %c0_7 = arith.constant 0 : index
    %c0_8 = arith.constant 0 : index
    %9 = vector.load %arg4[%c1, %c0_7, %c0_8] : memref<2x4x128xf32, #tpu.memory_space<vmem>>, vector<1x4x128xf32>
    %10 = vector.shape_cast %9 : vector<1x4x128xf32> to vector<4x128xf32>
    %11 = arith.truncf %10 : vector<4x128xf32> to vector<4x128xbf16>
    %cst_9 = arith.constant dense<0.000000e+00> : vector<8x128xf32>
    %12 = tpu.matmul %1, %11, %cst_9 {dimension_numbers = #tpu.dot_dimension_numbers<[1], [0], [0], [1], [0, 0, 1, 1], [], []>} : vector<8x4xbf16>, vector<4x128xbf16>, vector<8x128xf32> -> vector<8x128xf32>
    %c1_10 = arith.constant 1 : index
    %c0_11 = arith.constant 0 : index
    %c0_12 = arith.constant 0 : index
    %13 = vector.load %arg5[%c1_10, %c0_11, %c0_12] : memref<2x8x128xf32, #tpu.memory_space<vmem>>, vector<1x8x128xf32>
    %14 = vector.shape_cast %13 : vector<1x8x128xf32> to vector<8x128xf32>
    %15 = vector.shape_cast %12 : vector<8x128xf32> to vector<1x8x128xf32>
    tpu.vector_store %arg5[%c1_10, %c0_11, %c0_12], %15 {strides = array<i32>} : memref<2x8x128xf32, #tpu.memory_space<vmem>>, vector<1x8x128xf32>,
    return
  }
  func.func @transform_0(%arg0: i32, %arg1: i32, %arg2: i32) -> (i32, i32) {
    %c0_i32 = arith.constant 0 : i32
    %c0_i32_0 = arith.constant 0 : i32
    return %arg0, %c0_i32 : i32, i32
  }
  func.func @transform_1(%arg0: i32, %arg1: i32, %arg2: i32) -> (i32, i32, i32) {
    %c0_i32 = arith.constant 0 : i32
    %c0_i32_0 = arith.constant 0 : i32
    return %arg1, %c0_i32, %arg2 : i32, i32, i32
  }
  func.func @transform_2(%arg0: i32, %arg1: i32, %arg2: i32) -> (i32, i32, i32) {
    %c0_i32 = arith.constant 0 : i32
    return %arg1, %arg0, %arg2 : i32, i32, i32
  }
}

</mosaic_0001>

<llo_original>
// kernel: tpu_custom_call.1
$region0: #{tpu_custom_call.1}
  #allocation0 [shape = 'u32[]', space=smem, size = 0x4, offset = 0x4, fixed_abs, tag = 'smem constant byte address 0x4 - core index']
  #allocation1 [shape = 'u32[144,128]{1,0:T(1,128)}', space=vmem, size = 0x12000, scoped, tag = 'internal scratch']
  %s0 = inlined_call_operand.vmem [shape: f32[8,4], index: 0, kind: input, shape index: {}]
  %s1 = inlined_call_operand.hbm [shape: f32[2,4,256], index: 1, kind: input, shape index: {}]
  %s2 = inlined_call_operand.hbm [shape: f32[2,8,256], index: 2, kind: output, shape index: {}]
  %s3 = sld [smem:[#allocation0]]
  $region45: #{tpu_custom_call.1} parent=0
    _
  %s5 = ssub.s32 1, %s3
  %s6 = scalar_select 0, %s5, %s3
  $region1: #{tpu_custom_call.1} parent=0
    #allocation2 [shape = 'u8[8192]{0}', space=vmem, size = 0x2000, scoped, tag = 'input window, operand 1']
    #allocation3 [shape = 's32[2]{0}', space=sflag, size = 0x8, scoped, tag = 'scoped memory for tpu_custom_call.1']
    #allocation4 [shape = 's32[2]{0}', space=sflag, size = 0x8, scoped, tag = 'scoped memory for tpu_custom_call.1']
    #allocation5 [shape = 'u8[16384]{0}', space=vmem, size = 0x4000, scoped, tag = 'output window, operand 0']
    %7 = vsyncpa [#allocation3], 0
    %s8 = scalar_lea.sflag [#allocation3], 1
    %9 = vsyncpa %s8, 0
    %10 = vsyncpa [#allocation4], 0
    %s11 = scalar_lea.sflag [#allocation4], 1
    %12 = vsyncpa %s11, 0
    loop: start=0, step=1, limit=4
    $region2: #{tpu_custom_call.1} parent=1 // loop_pre_header
      _
    $region3: #{tpu_custom_call.1} parent=1 // loop_header
      %s14 = sphi 0, %s18
      %p15 = scmp.ge.s32.totalorder %s14, 4
      %s21 = sphi 0, %s40
      %s22 = sphi 0, %s36
      %s23 = sphi 0, %s32
      %s24 = sphi 0, %s21
      %s25 = sphi 0, %s22
      %s26 = sphi 0, %s23
      %s27 = sphi 0, %s24
      %s28 = sphi 0, %s25
      %s29 = sphi 0, %s26
      %s43 = sphi 0, %s45
      %s46 = sphi 0, %s43
      %s47 = sphi 0, %s46
      %s63 = sphi 0, %s47
      %s71 = sphi 0, %s73
      %s74 = sphi 0, %s71
      %s75 = sphi 0, %s74
      %s91 = sphi 0, %s75
      %s101 = sphi 0, %s103
      %s104 = sphi 0, %s101
      %s105 = sphi 0, %s104
      %s121 = sphi 0, %s105
    $region4: #{tpu_custom_call.1} parent=1 // loop_header_branch
      %17 = sbr.rel (%p15) target = $region8
    $region5: #{tpu_custom_call.1} parent=1 // loop_body
      %s19 = ssub.s32 %s14, 1
      %s20 = ssub.s32 %s14, 2
      %s30 = sadd.s32 1, %s23
      %p31 = scmp.ge.s32.totalorder %s30, 2
      %s32 = scalar_select %p31, 0, %s30
      %s33 = sadd.s32 1, %s22
      %s34 = scalar_select %p31, %s33, %s22
      %p35 = scmp.ge.s32.totalorder %s34, 1
      %s36 = scalar_select %p35, 0, %s34
      %s37 = sadd.s32 1, %s21
      %s38 = scalar_select %p35, %s37, %s21
      %p39 = scmp.ge.s32.totalorder %s38, 1
      %s40 = scalar_select %p39, 0, %s38
      %s41 = ssub.s32 %s21, %s40
      %p42 = scmp.eq.s32.totalorder %s41, 0
      %s44 = sadd.s32 %s43, 1
      %s45 = scalar_select %p42, %s43, %s44
      %p48 = pneg %p42
      %p49 = scmp.eq.s32.totalorder %s14, 1
      %p50 = por %p48, %p49
      %p51 = scmp.ne.s32.totalorder %s43, %s46
      %p52 = scmp.eq.s32.totalorder %s14, 0
      %p53 = por %p51, %p52
      %p54 = scmp.ne.s32.totalorder %s43, %s46
      %p55 = scmp.eq.s32.totalorder %s19, 1
      %p56 = por %p54, %p55
      %p57 = scmp.ne.s32.totalorder %s46, %s47
      %p58 = scmp.eq.s32.totalorder %s19, 0
      %p59 = por %p57, %p58
      %p60 = scmp.ne.s32.totalorder %s46, %s47
      %p61 = scmp.eq.s32.totalorder %s20, 1
      %p62 = por %p60, %p61
      %p64 = scmp.ne.s32.totalorder %s47, %s63
      %p65 = scmp.eq.s32.totalorder %s20, 0
      %p66 = por %p64, %p65
      %s67 = ssub.s32 %s22, %s36
      %s68 = ssub.s32 %s23, %s32
      %s69 = sor.u32 %s67, %s68
      %p70 = scmp.eq.s32.totalorder %s69, 0
      %s72 = sadd.s32 %s71, 1
      %s73 = scalar_select %p70, %s71, %s72
      %p76 = pneg %p70
      %p77 = scmp.eq.s32.totalorder %s14, 1
      %p78 = por %p76, %p77
      %p79 = scmp.ne.s32.totalorder %s71, %s74
      %p80 = scmp.eq.s32.totalorder %s14, 0
      %p81 = por %p79, %p80
      %p82 = scmp.ne.s32.totalorder %s71, %s74
      %p83 = scmp.eq.s32.totalorder %s19, 1
      %p84 = por %p82, %p83
      %p85 = scmp.ne.s32.totalorder %s74, %s75
      %p86 = scmp.eq.s32.totalorder %s19, 0
      %p87 = por %p85, %p86
      %p88 = scmp.ne.s32.totalorder %s74, %s75
      %p89 = scmp.eq.s32.totalorder %s20, 1
      %p90 = por %p88, %p89
      %p92 = scmp.ne.s32.totalorder %s75, %s91
      %p93 = scmp.eq.s32.totalorder %s20, 0
      %p94 = por %p92, %p93
      %s95 = ssub.s32 %s22, %s36
      %s96 = ssub.s32 %s21, %s40
      %s97 = sor.u32 %s95, %s96
      %s98 = ssub.s32 %s23, %s32
      %s99 = sor.u32 %s97, %s98
      %p100 = scmp.eq.s32.totalorder %s99, 0
      %s102 = sadd.s32 %s101, 1
      %s103 = scalar_select %p100, %s101, %s102
      %p106 = pneg %p100
      %p107 = scmp.eq.s32.totalorder %s14, 1
      %p108 = por %p106, %p107
      %p109 = scmp.ne.s32.totalorder %s101, %s104
      %p110 = scmp.eq.s32.totalorder %s14, 0
      %p111 = por %p109, %p110
      %p112 = scmp.ne.s32.totalorder %s101, %s104
      %p113 = scmp.eq.s32.totalorder %s19, 1
      %p114 = por %p112, %p113
      %p115 = scmp.ne.s32.totalorder %s104, %s105
      %p116 = scmp.eq.s32.totalorder %s19, 0
      %p117 = por %p115, %p116
      %p118 = scmp.ne.s32.totalorder %s104, %s105
      %p119 = scmp.eq.s32.totalorder %s20, 1
      %p120 = por %p118, %p119
      %p122 = scmp.ne.s32.totalorder %s105, %s121
      %p123 = scmp.eq.s32.totalorder %s20, 0
      %p124 = por %p122, %p123
      %p125 = scmp.le.s32.totalorder 1, %s14
      %p126 = scmp.lt.s32.totalorder %s14, 3
      %p127 = pnand %p125, %p126
      %p128 = pneg %p127
      // Predicated region
      $region9: #{tpu_custom_call.1} parent=5 // pred_check
        _
      $region10: #{tpu_custom_call.1} parent=5 // pred_check_branch
        %130 = sbr.rel (%p127) target = $region12
      $region11: #{tpu_custom_call.1} parent=5 // pred_region
        %s131 = ssub.s32 %s14, 1
        // Predicated region
        $region13: #{tpu_custom_call.1} parent=11 // pred_check
          %p132 = pneg %p59
        $region14: #{tpu_custom_call.1} parent=11 // pred_check_branch
          %134 = sbr.rel (%p132) target = $region16
        $region15: #{tpu_custom_call.1} parent=11 // pred_region
          %p135 = scmp.lt.s32.totalorder %s24, 0
          %s136 = scalar_select %p135, %s24, 0
          %s137 = smul.addr %s136, 8
          %s138 = scalar_lea.vmem %s0, %s137
        $region16: #{tpu_custom_call.1} parent=11 // pred_fallthru
          _
      $region12: #{tpu_custom_call.1} parent=5 // pred_fallthru
        _
      %p139 = scmp.lt.s32.totalorder %s14, 2
      // Predicated region
      $region17: #{tpu_custom_call.1} parent=5 // pred_check
        %p140 = pneg %p139
      $region18: #{tpu_custom_call.1} parent=5 // pred_check_branch
        %142 = sbr.rel (%p140) target = $region20
      $region19: #{tpu_custom_call.1} parent=5 // pred_region
        // Predicated region
        $region21: #{tpu_custom_call.1} parent=19 // pred_check
          %p143 = pneg %p81
        $region22: #{tpu_custom_call.1} parent=19 // pred_check_branch
          %145 = sbr.rel (%p143) target = $region24
        $region23: #{tpu_custom_call.1} parent=19 // pred_region
          %s146 = sand.u32 %s71, 1
          %s147 = scalar_lea.sflag [#allocation3], %s146
          %s148 = sand.u32 %s71, 1
          %s149 = smul.addr %s148, 8
          %s150 = scalar_lea.vmem [#allocation2], %s149
          %s151 = smul.u32 2, %s22
          %s153 = ssub.s32 128, 128
          %154 = vsyncadd %s147, %s153
          %s155 = smul.addr %s151, 2
          %s156 = sadd.s32 %s23, %s155
          %s157 = smul.addr %s156, 64
          %s158 = scalar_lea.hbm %s1, %s157
          %s159 = sshll.u32 %s150, 4
          %s160 = int_to_ptr.vmem [resolvable:$true] %s159
          %165 = dma.hbm_to_vmem [thread:$0]  %s158, 128, %s160, %s147, 128, 64, 4
        $region24: #{tpu_custom_call.1} parent=19 // pred_fallthru
          _
      $region20: #{tpu_custom_call.1} parent=5 // pred_fallthru
        _
      %p166 = scmp.le.s32.totalorder 1, %s14
      %p167 = scmp.lt.s32.totalorder %s14, 3
      %p168 = pnand %p166, %p167
      %p169 = pneg %p168
      // Predicated region
      $region25: #{tpu_custom_call.1} parent=5 // pred_check
        _
      $region26: #{tpu_custom_call.1} parent=5 // pred_check_branch
        %171 = sbr.rel (%p168) target = $region28
      $region27: #{tpu_custom_call.1} parent=5 // pred_region
        %s172 = ssub.s32 %s14, 1
        %s173 = sand.u32 %s74, 1
        %s174 = scalar_lea.sflag [#allocation3], %s173
        %s175 = sand.u32 %s74, 1
        %s176 = smul.addr %s175, 8
        %s177 = scalar_lea.vmem [#allocation2], %s176
        // Predicated region
        $region29: #{tpu_custom_call.1} parent=27 // pred_check
          %p178 = pneg %p87
        $region30: #{tpu_custom_call.1} parent=27 // pred_check_branch
          %180 = sbr.rel (%p178) target = $region32
        $region31: #{tpu_custom_call.1} parent=27 // pred_region
          %181 = dma.done %s174, 128
        $region32: #{tpu_custom_call.1} parent=27 // pred_fallthru
          _
        %p182 = scmp.lt.s32.totalorder %s24, 0
        %s183 = scalar_select %p182, %s24, 0
        %s184 = smul.addr %s183, 8
        %s185 = scalar_lea.vmem %s0, %s184
        %p186 = pneg %p59
        %p187 = pneg %p56
        %s188 = sand.u32 %s74, 1
        %s189 = scalar_lea.sflag [#allocation3], %s188
        %s190 = sand.u32 %s74, 1
        %s191 = smul.addr %s190, 8
        %s192 = scalar_lea.vmem [#allocation2], %s191
        %p193 = pneg %p87
        %p194 = pneg %p84
        %p195 = pneg %p117
        %p196 = pneg %p114
        %s197 = sand.u32 %s104, 1
        %s198 = scalar_lea.sflag [#allocation4], %s197
        %s199 = sand.u32 %s104, 1
        %s200 = smul.addr %s199, 16
        %s201 = scalar_lea.vmem [#allocation5], %s200
        %p202 = scmp.lt.s32.totalorder %s24, 0
        %s203 = scalar_select %p202, %s24, 0
        %s204 = smul.addr %s203, 8
        %s205 = scalar_lea.vmem %s0, %s204
        %s206 = smul.u32 2, %s25
        %s207 = smul.u32 2, %s25
        %v209 = vld [vmem:[%s205] sm:$0xff]
        %v210 = vpack.c.bf16 %v209, %v209
        %v211 = vld [vmem:[%s177] sm:$0xf]
        %v212 = vpack.c.bf16 %v211, %v211
        %vm213 = vcmask 31744
        %v215 = vsel %vm213, %v210, 0
        %vm217 = vcmask 1041408
        %v219 = vsel %vm217, %v212, 0
        %221 = vmatprep.subr.bf16.mxu0 0
        %222 = vmatpush1.bf16.msra.mxu0 0
        %223 = vmatprep.subr.bf16.mxu0 0
        %224 = vmatpush1.bf16.msra.mxu0 0
        %225 = vmatprep.subr.bf16.mxu0 0
        %226 = vmatpush1.bf16.msra.mxu0 0
        %227 = vmatprep.subr.bf16.mxu0 0
        %228 = vmatpush1.bf16.msra.mxu0 0
        %229 = vmatprep.subr.bf16.mxu0 0
        %230 = vmatpush1.bf16.msra.mxu0 0
        %231 = vmatprep.subr.bf16.mxu0 0
        %232 = vmatpush1.bf16.msra.mxu0 0
        %233 = vmatprep.subr.bf16.mxu0 0
        %234 = vmatpush1.bf16.msra.mxu0 0
        %235 = vmatprep.subr.bf16.mxu0 0
        %236 = vmatpush1.bf16.msra.mxu0 %v219
        %237 = vmatprep.subr.bf16.mxu0 0
        %238 = vmatpush2.bf16.msra.mxu0 0
        %239 = vmatprep.subr.bf16.mxu0 0
        %240 = vmatpush2.bf16.msra.mxu0 0
        %241 = vmatprep.subr.bf16.mxu0 0
        %242 = vmatpush2.bf16.msra.mxu0 0
        %243 = vmatprep.subr.bf16.mxu0 0
        %244 = vmatpush2.bf16.msra.mxu0 0
        %245 = vmatprep.subr.bf16.mxu0 0
        %246 = vmatpush2.bf16.msra.mxu0 0
        %247 = vmatprep.subr.bf16.mxu0 0
        %248 = vmatpush2.bf16.msra.mxu0 0
        %249 = vmatprep.subr.bf16.mxu0 0
        %250 = vmatpush2.bf16.msra.mxu0 0
        %251 = vmatprep.subr.bf16.mxu0 0
        %252 = vmatpush2.bf16.msra.mxu0 0
        %253 = vmatprep.mubr.bf16.mxu0 0
        %254 = vmatmul.mubr.bf16.gmra.mxu0 %v215
        %v255 = vpop.f32.mrf.mxu0
        %v256 = vadd.f32 0.0, %v255
        %v257 = vpop.f32.mrf.mxu0
        %v258 = vpop.f32.mrf.mxu0
        %v259 = vpop.f32.mrf.mxu0
        %260 = vdwg.mxu0
        %261 = vst [vmem:[%s201] sm:$0xff] %v256
        %s262 = scalar_lea.vmem %s177, 4 [#allocation2]
        %v263 = vld [vmem:[%s262] sm:$0xf]
        %v264 = vpack.c.bf16 %v263, %v263
        %v266 = vsel %vm217, %v264, 0
        %268 = vmatprep.subr.bf16.mxu0 0
        %269 = vmatpush1.bf16.msra.mxu0 0
        %270 = vmatprep.subr.bf16.mxu0 0
        %271 = vmatpush1.bf16.msra.mxu0 0
        %272 = vmatprep.subr.bf16.mxu0 0
        %273 = vmatpush1.bf16.msra.mxu0 0
        %274 = vmatprep.subr.bf16.mxu0 0
        %275 = vmatpush1.bf16.msra.mxu0 0
        %276 = vmatprep.subr.bf16.mxu0 0
        %277 = vmatpush1.bf16.msra.mxu0 0
        %278 = vmatprep.subr.bf16.mxu0 0
        %279 = vmatpush1.bf16.msra.mxu0 0
        %280 = vmatprep.subr.bf16.mxu0 0
        %281 = vmatpush1.bf16.msra.mxu0 0
        %282 = vmatprep.subr.bf16.mxu0 0
        %283 = vmatpush1.bf16.msra.mxu0 %v266
        %284 = vmatprep.subr.bf16.mxu0 0
        %285 = vmatpush2.bf16.msra.mxu0 0
        %286 = vmatprep.subr.bf16.mxu0 0
        %287 = vmatpush2.bf16.msra.mxu0 0
        %288 = vmatprep.subr.bf16.mxu0 0
        %289 = vmatpush2.bf16.msra.mxu0 0
        %290 = vmatprep.subr.bf16.mxu0 0
        %291 = vmatpush2.bf16.msra.mxu0 0
        %292 = vmatprep.subr.bf16.mxu0 0
        %293 = vmatpush2.bf16.msra.mxu0 0
        %294 = vmatprep.subr.bf16.mxu0 0
        %295 = vmatpush2.bf16.msra.mxu0 0
        %296 = vmatprep.subr.bf16.mxu0 0
        %297 = vmatpush2.bf16.msra.mxu0 0
        %298 = vmatprep.subr.bf16.mxu0 0
        %299 = vmatpush2.bf16.msra.mxu0 0
        %300 = vmatprep.mubr.bf16.mxu0 0
        %301 = vmatmul.mubr.bf16.gmra.mxu0 %v215
        %v302 = vpop.f32.mrf.mxu0
        %v303 = vadd.f32 0.0, %v302
        %v304 = vpop.f32.mrf.mxu0
        %v305 = vpop.f32.mrf.mxu0
        %v306 = vpop.f32.mrf.mxu0
        %307 = vdwg.mxu0
        %s308 = scalar_lea.vmem %s201, 8 [#allocation5]
        %309 = vst [vmem:[%s308] sm:$0xff] %v303
        %s310 = sand.u32 %s104, 1
        %s311 = scalar_lea.sflag [#allocation4], %s310
        %s312 = sand.u32 %s104, 1
        %s313 = smul.addr %s312, 16
        %s314 = scalar_lea.vmem [#allocation5], %s313
        // Predicated region
        $region33: #{tpu_custom_call.1} parent=27 // pred_check
          %p315 = pneg %p114
        $region34: #{tpu_custom_call.1} parent=27 // pred_check_branch
          %317 = sbr.rel (%p315) target = $region36
        $region35: #{tpu_custom_call.1} parent=27 // pred_region
          %s318 = smul.u32 2, %s25
          %s320 = ssub.s32 256, 256
          %321 = vsyncadd %s311, %s320
          %s322 = smul.addr %s24, 2
          %s323 = sadd.s32 %s26, %s322
          %s324 = smul.addr %s318, 2
          %s325 = sadd.s32 %s323, %s324
          %s326 = smul.addr %s325, 128
          %s327 = scalar_lea.hbm %s2, %s326
          %s328 = sshll.u32 %s314, 4
          %s329 = int_to_ptr.vmem [resolvable:$true] %s328
          %334 = dma.vmem_to_hbm [thread:$0]  %s329, 256, %s327, %s311, 128, 256, 8
        $region36: #{tpu_custom_call.1} parent=27 // pred_fallthru
          _
      $region28: #{tpu_custom_call.1} parent=5 // pred_fallthru
        _
      %p335 = scmp.le.s32.totalorder 2, %s14
      // Predicated region
      $region37: #{tpu_custom_call.1} parent=5 // pred_check
        %p336 = pneg %p335
      $region38: #{tpu_custom_call.1} parent=5 // pred_check_branch
        %338 = sbr.rel (%p336) target = $region40
      $region39: #{tpu_custom_call.1} parent=5 // pred_region
        %s339 = ssub.s32 %s14, 2
        // Predicated region
        $region41: #{tpu_custom_call.1} parent=39 // pred_check
          %p340 = pneg %p120
        $region42: #{tpu_custom_call.1} parent=39 // pred_check_branch
          %342 = sbr.rel (%p340) target = $region44
        $region43: #{tpu_custom_call.1} parent=39 // pred_region
          %s343 = sand.u32 %s105, 1
          %s344 = scalar_lea.sflag [#allocation4], %s343
          %s345 = sand.u32 %s105, 1
          %s346 = smul.addr %s345, 16
          %s347 = scalar_lea.vmem [#allocation5], %s346
          %348 = dma.done %s344, 256
        $region44: #{tpu_custom_call.1} parent=39 // pred_fallthru
          _
      $region40: #{tpu_custom_call.1} parent=5 // pred_fallthru
        _
    $region6: #{tpu_custom_call.1} parent=1 // loop_footer
      %s18 = sadd.s32 1, %s14
    $region7: #{tpu_custom_call.1} parent=1 // loop_footer_branch
      %13 = sbr.rel target = $region3
    $region8: #{tpu_custom_call.1} parent=1 // loop_exit
      _
    %349 = vsyncpa [#allocation3], 1
    %s350 = scalar_lea.sflag [#allocation3], 1
    %351 = vsyncpa %s350, 1
    %352 = vsyncpa [#allocation4], 1
    %s353 = scalar_lea.sflag [#allocation4], 1
    %354 = vsyncpa %s353, 1

</llo_original>
